<compile_context>
chip_gen: v6e
topology: v6e:2x2x1
jax: 0.10.0
libtpu: 0.0.40
codegen_flags: <defaults>
</compile_context>

<pallas_src>
import math
import functools

import jax
import jax.numpy as jnp
from jax import lax
from jax.experimental import pallas as pl
from jax.experimental.pallas import tpu as pltpu

LANE = 128


def _round_up(x, m):
    return (x + m - 1) // m * m


def _lcm(a, b):
    return a * b // math.gcd(a, b)


def _vmem_limit_bytes():
    # Generation-aware VMEM budget: 3/4 of per-core capacity (96 MiB on
    # v5e/v6e, 48 MiB on v7x).  Conservative 64 MiB fallback if unavailable.
    cap = 64 * 1024 * 1024
    try:
        info = pltpu.get_tpu_info()
        cap = int(getattr(info, "vmem_capacity_bytes", cap)) or cap
    except Exception:
        pass
    return (cap * 3) // 4


def _block_spec(block_shape, index_map, *, single_buffer=False):
    # Grid-invariant operands only need one VMEM buffer; fall back silently
    # if this jax build does not accept pipeline_mode / pl.Buffered(1).
    if single_buffer and hasattr(pl, "Buffered"):
        try:
            return pl.BlockSpec(block_shape, index_map,
                                pipeline_mode=pl.Buffered(1))
        except Exception:
            pass
    return pl.BlockSpec(block_shape, index_map)


# ---------------------------------------------------------------------------
# Parameter packing (init-time, NOT per forward call).
# ---------------------------------------------------------------------------
def pack_qkv_params(wq, bq, wk, bk, wv, bv, in_channels):
    """Fuse Q/K/V params into (C, 3*Wp) bf16 weight + (1, 3*Wp) f32 bias.

    Each of Q/K/V starts at a lane-aligned (128) column offset; the
    1/sqrt(in_channels) score scale is folded into the Q slice so the
    attention kernel needs no extra multiply.
    """
    C, W = wq.shape
    Wp = _round_up(W, LANE)
    norm = 1.0 / math.sqrt(in_channels)

    def as2d(b):
        return jnp.asarray(b, jnp.float32).reshape(1, -1)

    w_fused = jnp.zeros((C, 3 * Wp), jnp.bfloat16)
    b_fused = jnp.zeros((1, 3 * Wp), jnp.float32)
    parts = ((wq * norm, as2d(bq) * norm), (wk, as2d(bk)), (wv, as2d(bv)))
    for i, (w, b) in enumerate(parts):
        w_fused = w_fused.at[:, i * Wp:i * Wp + W].set(w.astype(jnp.bfloat16))
        b_fused = b_fused.at[:, i * Wp:i * Wp + W].set(b)
    return w_fused, b_fused


# ---------------------------------------------------------------------------
# Kernels
# ---------------------------------------------------------------------------
def _fused_small_seq_kernel(x_ref, w_ref, b_ref, o_ref, *, wp):
    # Whole layer for one batch element: QKV projection + scores + softmax +
    # PV matmul, all resident in VMEM.  1/sqrt(C) already folded into w/b.
    x = x_ref[0].astype(jnp.bfloat16)                       # (N, C)
    qkv = jnp.dot(x, w_ref[...],
                  preferred_element_type=jnp.float32) + b_ref[...]
    q = qkv[:, 0 * wp:1 * wp].astype(jnp.bfloat16)          # lane-aligned slices
    k = qkv[:, 1 * wp:2 * wp].astype(jnp.bfloat16)
    v = qkv[:, 2 * wp:3 * wp].astype(jnp.bfloat16)
    # scores = q @ k^T: contract last dims of both operands (no transpose).
    s = lax.dot_general(q, k, dimension_numbers=(((1,), (1,)), ((), ())),
                        preferred_element_type=jnp.float32)
    s = s - jnp.max(s, axis=-1, keepdims=True)
    e = jnp.exp(s)
    p = e / jnp.sum(e, axis=-1, keepdims=True)
    o_ref[0] = jnp.dot(p.astype(jnp.bfloat16), v,
                       preferred_element_type=jnp.float32).astype(o_ref.dtype)


def _qkv_proj_kernel(x_ref, w_ref, b_ref, o_ref):
    # Fused Q|K|V projection: (row_tile, C) @ (C, 3*Wp) bf16, f32 accumulate.
    acc = jnp.dot(x_ref[...], w_ref[...], preferred_element_type=jnp.float32)
    o_ref[...] = (acc + b_ref[...]).astype(o_ref.dtype)


def _flash_attn_kernel(q_ref, k_ref, v_ref, o_ref, *, seq_len, kv_chunk):
    # K/V for the whole (padded) sequence are VMEM-resident; stream them in
    # static kv_chunk slices with an online softmax.  The scale is already
    # folded into Q; the padding mask is only emitted for chunks that
    # actually contain padded keys.
    q = q_ref[0]                                            # (tq, Wp) bf16
    padded_len = k_ref.shape[1]
    tq, wp = q.shape

    m = jnp.full((tq, 1), -jnp.inf, jnp.float32)
    l = jnp.zeros((tq, 1), jnp.float32)
    acc = jnp.zeros((tq, wp), jnp.float32)

    # TODO(synk): for very long sequences (>~16 chunks) switch this static
    # unroll to a lax.fori_loop over pl.ds slices to bound trace size.
    for start in range(0, padded_len, kv_chunk):
        size = min(kv_chunk, padded_len - start)
        k = k_ref[0, start:start + size, :]                 # (size, Wp) bf16
        v = v_ref[0, start:start + size, :]
        s = lax.dot_general(q, k, dimension_numbers=(((1,), (1,)), ((), ())),
                            preferred_element_type=jnp.float32)
        if start + size > seq_len:                          # only padded chunks
            key_idx = start + lax.broadcasted_iota(jnp.int32, s.shape, 1)
            s = jnp.where(key_idx < seq_len, s, -1e30)
        m_new = jnp.maximum(m, jnp.max(s, axis=-1, keepdims=True))
        alpha = jnp.exp(m - m_new)
        p = jnp.exp(s - m_new)
        l = alpha * l + jnp.sum(p, axis=-1, keepdims=True)
        acc = alpha * acc + jnp.dot(p.astype(v.dtype), v,
                                    preferred_element_type=jnp.float32)
        m = m_new

    o_ref[0] = (acc * pl.reciprocal(l, approx=True)).astype(o_ref.dtype)


# ---------------------------------------------------------------------------
# Forward pass
# ---------------------------------------------------------------------------
def self_attention_forward(x, w_fused, b_fused, out_width, *,
                           fuse_seq_threshold=256, tq=256, tk=512):
    """x: (B, N, C) f32; packed params from pack_qkv_params.
    Returns (B, N, out_width) f32."""
    B, N, C = x.shape
    Wp = w_fused.shape[1] // 3
    assert w_fused.shape[0] == C, "packed weight / input channel mismatch"
    assert tq % 16 == 0 and tk % 16 == 0, "tiles must be sublane-aligned"
    vmem_limit = _vmem_limit_bytes()

    if N <= fuse_seq_threshold:
        # ---- fully fused path: one kernel invocation per batch element ----
        out_p = pl.pallas_call(
            functools.partial(_fused_small_seq_kernel, wp=Wp),
            out_shape=jax.ShapeDtypeStruct((B, N, Wp), jnp.float32),
            grid=(B,),
            in_specs=[
                pl.BlockSpec((1, N, C), lambda b: (b, 0, 0)),
                _block_spec((C, 3 * Wp), lambda b: (0, 0), single_buffer=True),
                _block_spec((1, 3 * Wp), lambda b: (0, 0), single_buffer=True),
            ],
            out_specs=pl.BlockSpec((1, N, Wp), lambda b: (b, 0, 0)),
            compiler_params=pltpu.CompilerParams(
                dimension_semantics=("parallel",),
                vmem_limit_bytes=vmem_limit),
        )(x, w_fused, b_fused)
        return out_p[:, :, :out_width]

    # ---- long-sequence path: fused QKV projection, then flash attention ---
    Np = _round_up(N, _lcm(tq, tk))
    x_p = jnp.zeros((B, Np, C), jnp.bfloat16).at[:, :N, :].set(
        x.astype(jnp.bfloat16))

    rows = B * Np
    row_tile = next(t for t in (512, 256, 128, 64, 32, 16, 8) if rows % t == 0)

    qkv = pl.pallas_call(
        _qkv_proj_kernel,
        out_shape=jax.ShapeDtypeStruct((rows, 3 * Wp), jnp.bfloat16),
        grid=(rows // row_tile,),
        in_specs=[
            pl.BlockSpec((row_tile, C), lambda r: (r, 0)),
            _block_spec((C, 3 * Wp), lambda r: (0, 0), single_buffer=True),
            _block_spec((1, 3 * Wp), lambda r: (0, 0), single_buffer=True),
        ],
        out_specs=pl.BlockSpec((row_tile, 3 * Wp), lambda r: (r, 0)),
        compiler_params=pltpu.CompilerParams(
            dimension_semantics=("parallel",),
            vmem_limit_bytes=vmem_limit),
    )(x_p.reshape(rows, C), w_fused, b_fused)
    qkv = qkv.reshape(B, Np, 3 * Wp)

    nq = Np // tq
    out_p = pl.pallas_call(
        functools.partial(_flash_attn_kernel, seq_len=N, kv_chunk=tk),
        out_shape=jax.ShapeDtypeStruct((B, Np, Wp), jnp.float32),
        grid=(B, nq),
        in_specs=[
            pl.BlockSpec((1, tq, Wp), lambda b, qi: (b, qi, 0)),    # Q tile
            _block_spec((1, Np, Wp), lambda b, qi: (b, 0, 1),
                        single_buffer=True),                         # K resident
            _block_spec((1, Np, Wp), lambda b, qi: (b, 0, 2),
                        single_buffer=True),                         # V resident
        ],
        out_specs=pl.BlockSpec((1, tq, Wp), lambda b, qi: (b, qi, 0)),
        compiler_params=pltpu.CompilerParams(
            dimension_semantics=("parallel", "parallel"),
            vmem_limit_bytes=vmem_limit),
    )(qkv, qkv, qkv)
    return out_p[:, :N, :out_width]


def self_attention_layer(x, wq, bq, wk, bk, wv, bv, in_channels, **kwargs):
    # Convenience wrapper with the original interface.  In production the
    # packing below belongs at module init (pure parameter prep).
    w_fused, b_fused = pack_qkv_params(wq, bq, wk, bk, wv, bv, in_channels)
    return self_attention_forward(x, w_fused, b_fused, wq.shape[1], **kwargs)


def _reference(x, wq, bq, wk, bk, wv, bv, in_channels):
    q = x @ wq + bq
    k = x @ wk + bk
    v = x @ wv + bv
    scores = jnp.einsum("bnd,bmd->bnm", q, k) * (1.0 / math.sqrt(in_channels))
    p = jax.nn.softmax(scores, axis=-1)
    return jnp.einsum("bnm,bmd->bnd", p, v)


if __name__ == "__main__":
    # Small shapes consistent with the module: x is (B, seq, in_channels).
    B, N, C_in, W = 2, 8, 16, 32

    key = jax.random.PRNGKey(0)
    kx, kq, kbq, kk, kbk, kv, kbv = jax.random.split(key, 7)

    x = jax.random.normal(kx, (B, N, C_in), dtype=jnp.float32)
    bound = 1.0 / math.sqrt(C_in)
    wq = jax.random.uniform(kq, (C_in, W), jnp.float32, -bound, bound)
    bq = jax.random.uniform(kbq, (1, W), jnp.float32, -bound, bound)
    wk = jax.random.uniform(kk, (C_in, W), jnp.float32, -bound, bound)
    bk = jax.random.uniform(kbk, (1, W), jnp.float32, -bound, bound)
    wv = jax.random.uniform(kv, (C_in, W), jnp.float32, -bound, bound)
    bv = jax.random.uniform(kbv, (1, W), jnp.float32, -bound, bound)

    # Parameter packing done once ("at init"), outside the forward path.
    w_fused, b_fused = pack_qkv_params(wq, bq, wk, bk, wv, bv, C_in)

    ref = _reference(x, wq, bq, wk, bk, wv, bv, C_in)

    # Fused small-sequence path (the regime of this module).
    out = jax.block_until_ready(self_attention_forward(x, w_fused, b_fused, W))
    assert out.shape == (B, N, W)
    assert jnp.allclose(out, ref, atol=2e-2, rtol=2e-2), "fused path mismatch"

    # Also exercise the long-sequence flash path (forced) on the same input.
    out2 = jax.block_until_ready(
        self_attention_forward(x, w_fused, b_fused, W, fuse_seq_threshold=0))
    assert out2.shape == (B, N, W)
    assert jnp.allclose(out2, ref, atol=2e-2, rtol=2e-2), "flash path mismatch"

    print("KERNEL_OK")
</pallas_src>

<mosaic_0001>
module attributes {stable_mosaic.version = 11 : i64} {
  func.func @_fused_small_seq_kernel(%arg0: i32, %arg1: memref<1x8x16xf32, #tpu.memory_space<vmem>>, %arg2: memref<16x384xbf16, #tpu.memory_space<vmem>>, %arg3: memref<1x384xf32, #tpu.memory_space<vmem>>, %arg4: memref<1x8x128xf32, #tpu.memory_space<vmem>>) attributes {dimension_semantics = [#tpu.dimension_semantics<parallel>], iteration_bounds = array<i64: 2>, scalar_prefetch = 0 : i64, scratch_operands = 0 : i64, tpu.core_type = #tpu.core_type<tc>, window_params = [{transform_indices = @transform_0, window_bounds = array<i64: 1, 8, 16>}, {pipeline_mode = #tpu.pipeline_mode<synchronous>, transform_indices = @transform_1, window_bounds = array<i64: 16, 384>}, {pipeline_mode = #tpu.pipeline_mode<synchronous>, transform_indices = @transform_2, window_bounds = array<i64: 1, 384>}, {transform_indices = @transform_3, window_bounds = array<i64: 1, 8, 128>}]} {
    %c0 = arith.constant 0 : index
    %c0_0 = arith.constant 0 : index
    %c0_1 = arith.constant 0 : index
    %0 = vector.load %arg1[%c0, %c0_0, %c0_1] : memref<1x8x16xf32, #tpu.memory_space<vmem>>, vector<1x8x16xf32>
    %1 = vector.shape_cast %0 : vector<1x8x16xf32> to vector<8x16xf32>
    %2 = arith.truncf %1 : vector<8x16xf32> to vector<8x16xbf16>
    %c0_2 = arith.constant 0 : index
    %c0_3 = arith.constant 0 : index
    %3 = vector.load %arg2[%c0_2, %c0_3] : memref<16x384xbf16, #tpu.memory_space<vmem>>, vector<16x384xbf16>
    %cst = arith.constant dense<0.000000e+00> : vector<8x384xf32>
    %4 = tpu.matmul %2, %3, %cst {dimension_numbers = #tpu.dot_dimension_numbers<[1], [0], [0], [1], [0, 0, 1, 1], [], []>} : vector<8x16xbf16>, vector<16x384xbf16>, vector<8x384xf32> -> vector<8x384xf32>
    %c0_4 = arith.constant 0 : index
    %c0_5 = arith.constant 0 : index
    %5 = vector.load %arg3[%c0_4, %c0_5] : memref<1x384xf32, #tpu.memory_space<vmem>>, vector<1x384xf32>
    %6 = vector.broadcast %5 : vector<1x384xf32> to vector<8x384xf32>
    %7 = arith.addf %4, %6 : vector<8x384xf32>
    %8 = vector.extract_strided_slice %7 {offsets = [0, 0], sizes = [8, 128], strides = [1, 1]} : vector<8x384xf32> to vector<8x128xf32>
    %9 = arith.truncf %8 : vector<8x128xf32> to vector<8x128xbf16>
    %10 = vector.extract_strided_slice %7 {offsets = [0, 128], sizes = [8, 128], strides = [1, 1]} : vector<8x384xf32> to vector<8x128xf32>
    %11 = arith.truncf %10 : vector<8x128xf32> to vector<8x128xbf16>
    %12 = vector.extract_strided_slice %7 {offsets = [0, 256], sizes = [8, 128], strides = [1, 1]} : vector<8x384xf32> to vector<8x128xf32>
    %13 = arith.truncf %12 : vector<8x128xf32> to vector<8x128xbf16>
    %cst_6 = arith.constant dense<0.000000e+00> : vector<8x8xf32>
    %14 = tpu.matmul %9, %11, %cst_6 {dimension_numbers = #tpu.dot_dimension_numbers<[1], [1], [0], [0], [0, 0, 1, 0], [], []>} : vector<8x128xbf16>, vector<8x128xbf16>, vector<8x8xf32> -> vector<8x8xf32>
    %cst_7 = arith.constant dense<0xFF800000> : vector<8xf32>
    %15 = vector.multi_reduction <maximumf>, %14, %cst_7 [1] : vector<8x8xf32> to vector<8xf32>
    %16 = vector.shape_cast %15 : vector<8xf32> to vector<8x1xf32>
    %17 = vector.broadcast %16 : vector<8x1xf32> to vector<8x8xf32>
    %18 = arith.subf %14, %17 : vector<8x8xf32>
    %19 = math.exp %18 : vector<8x8xf32>
    %cst_8 = arith.constant dense<0.000000e+00> : vector<8xf32>
    %20 = vector.multi_reduction <add>, %19, %cst_8 [1] : vector<8x8xf32> to vector<8xf32>
    %21 = vector.shape_cast %20 : vector<8xf32> to vector<8x1xf32>
    %22 = vector.broadcast %21 : vector<8x1xf32> to vector<8x8xf32>
    %23 = arith.divf %19, %22 : vector<8x8xf32>
    %24 = arith.truncf %23 : vector<8x8xf32> to vector<8x8xbf16>
    %cst_9 = arith.constant dense<0.000000e+00> : vector<8x128xf32>
    %25 = tpu.matmul %24, %13, %cst_9 {dimension_numbers = #tpu.dot_dimension_numbers<[1], [0], [0], [1], [0, 0, 1, 1], [], []>} : vector<8x8xbf16>, vector<8x128xbf16>, vector<8x128xf32> -> vector<8x128xf32>
    %c0_10 = arith.constant 0 : index
    %c0_11 = arith.constant 0 : index
    %c0_12 = arith.constant 0 : index
    %26 = vector.load %arg4[%c0_10, %c0_11, %c0_12] : memref<1x8x128xf32, #tpu.memory_space<vmem>>, vector<1x8x128xf32>
    %27 = vector.shape_cast %26 : vector<1x8x128xf32> to vector<8x128xf32>
    %28 = vector.shape_cast %25 : vector<8x128xf32> to vector<1x8x128xf32>
    tpu.vector_store %arg4[%c0_10, %c0_11, %c0_12], %28 {strides = array<i32>} : memref<1x8x128xf32, #tpu.memory_space<vmem>>, vector<1x8x128xf32>,
    return
  }
  func.func @transform_0(%arg0: i32) -> (i32, i32, i32) {
    %c0_i32 = arith.constant 0 : i32
    %c0_i32_0 = arith.constant 0 : i32
    %c0_i32_1 = arith.constant 0 : i32
    return %arg0, %c0_i32, %c0_i32_0 : i32, i32, i32
  }
  func.func @transform_1(%arg0: i32) -> (i32, i32) {
    %c0_i32 = arith.constant 0 : i32
    %c0_i32_0 = arith.constant 0 : i32
    %c0_i32_1 = arith.constant 0 : i32
    return %c0_i32, %c0_i32_0 : i32, i32
  }
  func.func @transform_2(%arg0: i32) -> (i32, i32) {
    %c0_i32 = arith.constant 0 : i32
    %c0_i32_0 = arith.constant 0 : i32
    %c0_i32_1 = arith.constant 0 : i32
    return %c0_i32, %c0_i32_0 : i32, i32
  }
  func.func @transform_3(%arg0: i32) -> (i32, i32, i32) {
    %c0_i32 = arith.constant 0 : i32
    %c0_i32_0 = arith.constant 0 : i32
    %c0_i32_1 = arith.constant 0 : i32
    return %arg0, %c0_i32, %c0_i32_0 : i32, i32, i32
  }
}

</mosaic_0001>

<llo_original>
// kernel: tpu_custom_call.1
$region0: #{tpu_custom_call.1}
  #allocation0 [shape = 'u32[]', space=smem, size = 0x4, offset = 0x4, fixed_abs, tag = 'smem constant byte address 0x4 - core index']
  #allocation1 [shape = 'u32[144,128]{1,0:T(1,128)}', space=vmem, size = 0x12000, scoped, tag = 'internal scratch']
  %s0 = inlined_call_operand.hbm [shape: f32[2,8,16], index: 0, kind: input, shape index: {}]
  %s1 = inlined_call_operand.hbm [shape: bf16[16,384], index: 1, kind: input, shape index: {}]
  %s2 = inlined_call_operand.vmem [shape: f32[1,384], index: 2, kind: input, shape index: {}]
  %s3 = inlined_call_operand.hbm [shape: f32[2,8,128], index: 3, kind: output, shape index: {}]
  %s4 = sld [smem:[#allocation0]]
  $region53: #{tpu_custom_call.1} parent=0
    _
  %s6 = ssub.s32 1, %s4
  %s7 = scalar_select 0, %s6, %s4
  $region1: #{tpu_custom_call.1} parent=0
    #allocation2 [shape = 'u8[8192]{0}', space=vmem, size = 0x2000, scoped, tag = 'input window, operand 0']
    #allocation3 [shape = 's32[2]{0}', space=sflag, size = 0x8, scoped, tag = 'scoped memory for tpu_custom_call.1']
    #allocation4 [shape = 's32[2]{0}', space=sflag, size = 0x8, scoped, tag = 'scoped memory for tpu_custom_call.1']
    #allocation5 [shape = 'u8[12288]{0}', space=vmem, size = 0x3000, scoped, tag = 'input window, operand 1, single buffered']
    #allocation6 [shape = 's32[1]{0}', space=sflag, size = 0x4, scoped, tag = 'scoped memory for tpu_custom_call.1']
    #allocation7 [shape = 'u8[8192]{0}', space=vmem, size = 0x2000, scoped, tag = 'output window, operand 0']
    %8 = vsyncpa [#allocation3], 0
    %s9 = scalar_lea.sflag [#allocation3], 1
    %10 = vsyncpa %s9, 0
    %11 = vsyncpa [#allocation6], 0
    %12 = vsyncpa [#allocation4], 0
    %s13 = scalar_lea.sflag [#allocation4], 1
    %14 = vsyncpa %s13, 0
    loop: start=0, step=1, limit=4
    $region2: #{tpu_custom_call.1} parent=1 // loop_pre_header
      _
    $region3: #{tpu_custom_call.1} parent=1 // loop_header
      %s16 = sphi 0, %s20
      %p17 = scmp.ge.s32.totalorder %s16, 4
      %s26 = sphi 0, %s28
      %s29 = sphi 0, %s26
      %s30 = sphi 0, %s29
      %s46 = sphi 0, %s30
      %s50 = sphi 0, %s50
      %s52 = sphi 0, %s50
      %s53 = sphi 0, %s52
      %s67 = sphi 0, %s53
      %s71 = sphi 0, %s71
      %s73 = sphi 0, %s71
      %s74 = sphi 0, %s73
      %s88 = sphi 0, %s74
      %s94 = sphi 0, %s96
      %s97 = sphi 0, %s94
      %s98 = sphi 0, %s97
      %s114 = sphi 0, %s98
    $region4: #{tpu_custom_call.1} parent=1 // loop_header_branch
      %19 = sbr.rel (%p17) target = $region8
    $region5: #{tpu_custom_call.1} parent=1 // loop_body
      %s21 = ssub.s32 %s16, 1
      %s22 = ssub.s32 %s16, 2
      %s23 = sadd.s32 %s16, 1
      %s24 = ssub.s32 %s16, %s23
      %p25 = scmp.eq.s32.totalorder %s24, 0
      %s27 = sadd.s32 %s26, 1
      %s28 = scalar_select %p25, %s26, %s27
      %p31 = pneg %p25
      %p32 = scmp.eq.s32.totalorder %s16, 1
      %p33 = por %p31, %p32
      %p34 = scmp.ne.s32.totalorder %s26, %s29
      %p35 = scmp.eq.s32.totalorder %s16, 0
      %p36 = por %p34, %p35
      %p37 = scmp.ne.s32.totalorder %s26, %s29
      %p38 = scmp.eq.s32.totalorder %s21, 1
      %p39 = por %p37, %p38
      %p40 = scmp.ne.s32.totalorder %s29, %s30
      %p41 = scmp.eq.s32.totalorder %s21, 0
      %p42 = por %p40, %p41
      %p43 = scmp.ne.s32.totalorder %s29, %s30
      %p44 = scmp.eq.s32.totalorder %s22, 1
      %p45 = por %p43, %p44
      %p47 = scmp.ne.s32.totalorder %s30, %s46
      %p48 = scmp.eq.s32.totalorder %s22, 0
      %p49 = por %p47, %p48
      %s51 = sadd.s32 %s50, 1
      %p54 = scmp.eq.s32.totalorder %s16, 1
      %p55 = scmp.ne.s32.totalorder %s50, %s52
      %p56 = scmp.eq.s32.totalorder %s16, 0
      %p57 = por %p55, %p56
      %p58 = scmp.ne.s32.totalorder %s50, %s52
      %p59 = scmp.eq.s32.totalorder %s21, 1
      %p60 = por %p58, %p59
      %p61 = scmp.ne.s32.totalorder %s52, %s53
      %p62 = scmp.eq.s32.totalorder %s21, 0
      %p63 = por %p61, %p62
      %p64 = scmp.ne.s32.totalorder %s52, %s53
      %p65 = scmp.eq.s32.totalorder %s22, 1
      %p66 = por %p64, %p65
      %p68 = scmp.ne.s32.totalorder %s53, %s67
      %p69 = scmp.eq.s32.totalorder %s22, 0
      %p70 = por %p68, %p69
      %s72 = sadd.s32 %s71, 1
      %p75 = scmp.eq.s32.totalorder %s16, 1
      %p76 = scmp.ne.s32.totalorder %s71, %s73
      %p77 = scmp.eq.s32.totalorder %s16, 0
      %p78 = por %p76, %p77
      %p79 = scmp.ne.s32.totalorder %s71, %s73
      %p80 = scmp.eq.s32.totalorder %s21, 1
      %p81 = por %p79, %p80
      %p82 = scmp.ne.s32.totalorder %s73, %s74
      %p83 = scmp.eq.s32.totalorder %s21, 0
      %p84 = por %p82, %p83
      %p85 = scmp.ne.s32.totalorder %s73, %s74
      %p86 = scmp.eq.s32.totalorder %s22, 1
      %p87 = por %p85, %p86
      %p89 = scmp.ne.s32.totalorder %s74, %s88
      %p90 = scmp.eq.s32.totalorder %s22, 0
      %p91 = por %p89, %p90
      %s92 = ssub.s32 %s16, %s23
      %p93 = scmp.eq.s32.totalorder %s92, 0
      %s95 = sadd.s32 %s94, 1
      %s96 = scalar_select %p93, %s94, %s95
      %p99 = pneg %p93
      %p100 = scmp.eq.s32.totalorder %s16, 1
      %p101 = por %p99, %p100
      %p102 = scmp.ne.s32.totalorder %s94, %s97
      %p103 = scmp.eq.s32.totalorder %s16, 0
      %p104 = por %p102, %p103
      %p105 = scmp.ne.s32.totalorder %s94, %s97
      %p106 = scmp.eq.s32.totalorder %s21, 1
      %p107 = por %p105, %p106
      %p108 = scmp.ne.s32.totalorder %s97, %s98
      %p109 = scmp.eq.s32.totalorder %s21, 0
      %p110 = por %p108, %p109
      %p111 = scmp.ne.s32.totalorder %s97, %s98
      %p112 = scmp.eq.s32.totalorder %s22, 1
      %p113 = por %p111, %p112
      %p115 = scmp.ne.s32.totalorder %s98, %s114
      %p116 = scmp.eq.s32.totalorder %s22, 0
      %p117 = por %p115, %p116
      %p118 = scmp.le.s32.totalorder 1, %s16
      %p119 = scmp.lt.s32.totalorder %s16, 3
      %p120 = pnand %p118, %p119
      %p121 = pneg %p120
      // Predicated region
      $region9: #{tpu_custom_call.1} parent=5 // pred_check
        _
      $region10: #{tpu_custom_call.1} parent=5 // pred_check_branch
        %123 = sbr.rel (%p120) target = $region12
      $region11: #{tpu_custom_call.1} parent=5 // pred_region
        %s124 = ssub.s32 %s16, 1
        // Predicated region
        $region13: #{tpu_custom_call.1} parent=11 // pred_check
          %p125 = pneg %p63
        $region14: #{tpu_custom_call.1} parent=11 // pred_check_branch
          %127 = sbr.rel (%p125) target = $region16
        $region15: #{tpu_custom_call.1} parent=11 // pred_region
          %s129 = ssub.s32 384, 384
          %130 = vsyncadd [#allocation6], %s129
          %s131 = sshll.u32 [#allocation5], 4
          %s132 = int_to_ptr.vmem [resolvable:$true] %s131
          %137 = dma.hbm_to_vmem [thread:$0]  %s1, 384, %s132, [#allocation6], 192, 192, 12
        $region16: #{tpu_custom_call.1} parent=11 // pred_fallthru
          _
        // Predicated region
        $region17: #{tpu_custom_call.1} parent=11 // pred_check
          %p138 = pneg %p84
        $region18: #{tpu_custom_call.1} parent=11 // pred_check_branch
          %140 = sbr.rel (%p138) target = $region20
        $region19: #{tpu_custom_call.1} parent=11 // pred_region
          _
        $region20: #{tpu_custom_call.1} parent=11 // pred_fallthru
          _
      $region12: #{tpu_custom_call.1} parent=5 // pred_fallthru
        _
      %p141 = scmp.lt.s32.totalorder %s16, 2
      // Predicated region
      $region21: #{tpu_custom_call.1} parent=5 // pred_check
        %p142 = pneg %p141
      $region22: #{tpu_custom_call.1} parent=5 // pred_check_branch
        %144 = sbr.rel (%p142) target = $region24
      $region23: #{tpu_custom_call.1} parent=5 // pred_region
        // Predicated region
        $region25: #{tpu_custom_call.1} parent=23 // pred_check
          %p145 = pneg %p36
        $region26: #{tpu_custom_call.1} parent=23 // pred_check_branch
          %147 = sbr.rel (%p145) target = $region28
        $region27: #{tpu_custom_call.1} parent=23 // pred_region
          %s148 = sand.u32 %s26, 1
          %s149 = scalar_lea.sflag [#allocation3], %s148
          %s150 = sand.u32 %s26, 1
          %s151 = smul.addr %s150, 8
          %s152 = scalar_lea.vmem [#allocation2], %s151
          %s154 = ssub.s32 128, 128
          %155 = vsyncadd %s149, %s154
          %s156 = smul.addr %s16, 128
          %s157 = scalar_lea.hbm %s0, %s156
          %s159 = sshll.u32 %s152, 4
          %s160 = int_to_ptr.vmem [resolvable:$true] %s159
          %162 = dma.hbm_to_vmem [thread:$0]  %s157, 128, %s160, %s149
        $region28: #{tpu_custom_call.1} parent=23 // pred_fallthru
          _
      $region24: #{tpu_custom_call.1} parent=5 // pred_fallthru
        _
      %p163 = scmp.le.s32.totalorder 1, %s16
      %p164 = scmp.lt.s32.totalorder %s16, 3
      %p165 = pnand %p163, %p164
      %p166 = pneg %p165
      // Predicated region
      $region29: #{tpu_custom_call.1} parent=5 // pred_check
        _
      $region30: #{tpu_custom_call.1} parent=5 // pred_check_branch
        %168 = sbr.rel (%p165) target = $region32
      $region31: #{tpu_custom_call.1} parent=5 // pred_region
        %s169 = ssub.s32 %s16, 1
        %s170 = sand.u32 %s29, 1
        %s171 = scalar_lea.sflag [#allocation3], %s170
        %s172 = sand.u32 %s29, 1
        %s173 = smul.addr %s172, 8
        %s174 = scalar_lea.vmem [#allocation2], %s173
        // Predicated region
        $region33: #{tpu_custom_call.1} parent=31 // pred_check
          %p175 = pneg %p42
        $region34: #{tpu_custom_call.1} parent=31 // pred_check_branch
          %177 = sbr.rel (%p175) target = $region36
        $region35: #{tpu_custom_call.1} parent=31 // pred_region
          %178 = dma.done %s171, 128
        $region36: #{tpu_custom_call.1} parent=31 // pred_fallthru
          _
        // Predicated region
        $region37: #{tpu_custom_call.1} parent=31 // pred_check
          %p179 = pneg %p63
        $region38: #{tpu_custom_call.1} parent=31 // pred_check_branch
          %181 = sbr.rel (%p179) target = $region40
        $region39: #{tpu_custom_call.1} parent=31 // pred_region
          %182 = dma.done [#allocation6], 384
        $region40: #{tpu_custom_call.1} parent=31 // pred_fallthru
          _
        %s183 = sand.u32 %s29, 1
        %s184 = scalar_lea.sflag [#allocation3], %s183
        %s185 = sand.u32 %s29, 1
        %s186 = smul.addr %s185, 8
        %s187 = scalar_lea.vmem [#allocation2], %s186
        %p188 = pneg %p42
        %p189 = pneg %p39
        %p190 = pneg %p63
        %p191 = pneg %p60
        %p192 = pneg %p84
        %p193 = pneg %p81
        %p194 = pneg %p110
        %p195 = pneg %p107
        %s196 = sand.u32 %s97, 1
        %s197 = scalar_lea.sflag [#allocation4], %s196
        %s198 = sand.u32 %s97, 1
        %s199 = smul.addr %s198, 8
        %s200 = scalar_lea.vmem [#allocation7], %s199
        %v202 = vld [vmem:[%s174] sm:$0xff]
        %v203 = vpack.c.bf16 %v202, %v202
        %v204 = vld [vmem:[#allocation5] sm:$0xff]
        %v205 = vld [vmem:[#allocation5 + $0x8] sm:$0xf]
        %v206 = vld [vmem:[#allocation5 + $0xc] sm:$0xff]
        %v207 = vld [vmem:[#allocation5 + $0x14] sm:$0xf]
        %v208 = vld [vmem:[%s2] sm:$0x7]
        %v210 = vlaneseq
        %v211 = vshrl.u32 %v210, 7
        %v212 = vsub.s32 0, %v211
        %v213 = vrot.slane %v208, %v212
        %v214 = vlaneseq
        %v215 = vshrl.u32 %v214, 7
        %v216 = vsub.s32 1, %v215
        %v217 = vrot.slane %v208, %v216
        %v218 = vlaneseq
        %v219 = vshrl.u32 %v218, 7
        %v220 = vsub.s32 2, %v219
        %v221 = vrot.slane %v208, %v220
        %v229 = vunpack.c.l.b16 %v204
        %v230 = vunpack.c.h.b16 %v204
        %v231 = vunpack.c.l.b16 %v205
        %v232 = vunpack.c.l.b16 %v206
        %v233 = vunpack.c.h.b16 %v206
        %v234 = vunpack.c.l.b16 %v207
        %v235 = vpack.c.b16 %v232, %v229
        %v236 = vpack.c.b16 %v233, %v230
        %v237 = vpack.c.b16 %v234, %v231
        %vm241 = vcmask 130048
        %v243 = vsel %vm241, %v203, 0
        %245 = vmatprep.subr.bf16.mxu0 0
        %246 = vmatpush1.bf16.msra.mxu0 0
        %247 = vmatprep.subr.bf16.mxu0 0
        %248 = vmatpush1.bf16.msra.mxu0 0
        %249 = vmatprep.subr.bf16.mxu0 0
        %250 = vmatpush1.bf16.msra.mxu0 0
        %251 = vmatprep.subr.bf16.mxu0 0
        %252 = vmatpush1.bf16.msra.mxu0 0
        %253 = vmatprep.subr.bf16.mxu0 0
        %254 = vmatpush1.bf16.msra.mxu0 0
        %255 = vmatprep.subr.bf16.mxu0 0
        %256 = vmatpush1.bf16.msra.mxu0 0
        %257 = vmatprep.subr.bf16.mxu0 0
        %258 = vmatpush1.bf16.msra.mxu0 0
        %259 = vmatprep.subr.bf16.mxu0 %v236
        %260 = vmatpush1.bf16.msra.mxu0 %v235
        %261 = vmatprep.subr.bf16.mxu0 0
        %262 = vmatpush2.bf16.msra.mxu0 0
        %263 = vmatprep.subr.bf16.mxu0 0
        %264 = vmatpush2.bf16.msra.mxu0 0
        %265 = vmatprep.subr.bf16.mxu0 0
        %266 = vmatpush2.bf16.msra.mxu0 0
        %267 = vmatprep.subr.bf16.mxu0 0
        %268 = vmatpush2.bf16.msra.mxu0 0
        %269 = vmatprep.subr.bf16.mxu0 0
        %270 = vmatpush2.bf16.msra.mxu0 0
        %271 = vmatprep.subr.bf16.mxu0 0
        %272 = vmatpush2.bf16.msra.mxu0 0
        %273 = vmatprep.subr.bf16.mxu0 0
        %274 = vmatpush2.bf16.msra.mxu0 0
        %275 = vmatprep.subr.bf16.mxu0 0
        %276 = vmatpush2.bf16.msra.mxu0 0
        %277 = vmatprep.mubr.bf16.mxu0 0
        %278 = vmatmul.mubr.bf16.gmra.mxu0 %v243
        %v279 = vpop.f32.mrf.mxu0
        %v280 = vadd.f32 %v213, %v279
        %v281 = vpop.f32.mrf.mxu0
        %v282 = vadd.f32 %v217, %v281
        %v283 = vpop.f32.mrf.mxu0
        %v284 = vpop.f32.mrf.mxu0
        %285 = vdwg.mxu0
        %286 = vmatprep.subr.bf16.mxu0 0
        %287 = vmatpush1.bf16.msra.mxu0 0
        %288 = vmatprep.subr.bf16.mxu0 0
        %289 = vmatpush1.bf16.msra.mxu0 0
        %290 = vmatprep.subr.bf16.mxu0 0
        %291 = vmatpush1.bf16.msra.mxu0 0
        %292 = vmatprep.subr.bf16.mxu0 0
        %293 = vmatpush1.bf16.msra.mxu0 0
        %294 = vmatprep.subr.bf16.mxu0 0
        %295 = vmatpush1.bf16.msra.mxu0 0
        %296 = vmatprep.subr.bf16.mxu0 0
        %297 = vmatpush1.bf16.msra.mxu0 0
        %298 = vmatprep.subr.bf16.mxu0 0
        %299 = vmatpush1.bf16.msra.mxu0 0
        %300 = vmatprep.subr.bf16.mxu0 0
        %301 = vmatpush1.bf16.msra.mxu0 %v237
        %302 = vmatprep.subr.bf16.mxu0 0
        %303 = vmatpush2.bf16.msra.mxu0 0
        %304 = vmatprep.subr.bf16.mxu0 0
        %305 = vmatpush2.bf16.msra.mxu0 0
        %306 = vmatprep.subr.bf16.mxu0 0
        %307 = vmatpush2.bf16.msra.mxu0 0
        %308 = vmatprep.subr.bf16.mxu0 0
        %309 = vmatpush2.bf16.msra.mxu0 0
        %310 = vmatprep.subr.bf16.mxu0 0
        %311 = vmatpush2.bf16.msra.mxu0 0
        %312 = vmatprep.subr.bf16.mxu0 0
        %313 = vmatpush2.bf16.msra.mxu0 0
        %314 = vmatprep.subr.bf16.mxu0 0
        %315 = vmatpush2.bf16.msra.mxu0 0
        %316 = vmatprep.subr.bf16.mxu0 0
        %317 = vmatpush2.bf16.msra.mxu0 0
        %318 = vmatprep.mubr.bf16.mxu0 0
        %319 = vmatmul.mubr.bf16.gmra.mxu0 %v243
        %v320 = vpop.f32.mrf.mxu0
        %v321 = vadd.f32 %v221, %v320
        %v322 = vpop.f32.mrf.mxu0
        %v323 = vpop.f32.mrf.mxu0
        %v324 = vpop.f32.mrf.mxu0
        %325 = vdwg.mxu0
        %v326 = vpack.c.bf16 %v280, %v280
        %v327 = vpack.c.bf16 %v282, %v282
        %v328 = vpack.c.bf16 %v321, %v321
        %329 = vmatprep.subr.bf16.mxu0 0
        %330 = vmatpush1.bf16.xpose.msra.mxu0 0
        %331 = vmatprep.subr.bf16.mxu0 0
        %332 = vmatpush1.bf16.xpose.msra.mxu0 0
        %333 = vmatprep.subr.bf16.mxu0 0
        %334 = vmatpush1.bf16.xpose.msra.mxu0 0
        %335 = vmatprep.subr.bf16.mxu0 0
        %336 = vmatpush1.bf16.xpose.msra.mxu0 0
        %337 = vmatprep.subr.bf16.mxu0 0
        %338 = vmatpush1.bf16.xpose.msra.mxu0 0
        %339 = vmatprep.subr.bf16.mxu0 0
        %340 = vmatpush1.bf16.xpose.msra.mxu0 0
        %341 = vmatprep.subr.bf16.mxu0 0
        %342 = vmatpush1.bf16.xpose.msra.mxu0 0
        %343 = vmatprep.subr.bf16.mxu0 0
        %344 = vmatpush1.bf16.xpose.msra.mxu0 %v327
        %345 = vmatprep.subr.bf16.mxu0 0
        %346 = vmatpush2.bf16.xpose.msra.mxu0 0
        %347 = vmatprep.subr.bf16.mxu0 0
        %348 = vmatpush2.bf16.xpose.msra.mxu0 0
        %349 = vmatprep.subr.bf16.mxu0 0
        %350 = vmatpush2.bf16.xpose.msra.mxu0 0
        %351 = vmatprep.subr.bf16.mxu0 0
        %352 = vmatpush2.bf16.xpose.msra.mxu0 0
        %353 = vmatprep.subr.bf16.mxu0 0
        %354 = vmatpush2.bf16.xpose.msra.mxu0 0
        %355 = vmatprep.subr.bf16.mxu0 0
        %356 = vmatpush2.bf16.xpose.msra.mxu0 0
        %357 = vmatprep.subr.bf16.mxu0 0
        %358 = vmatpush2.bf16.xpose.msra.mxu0 0
        %359 = vmatprep.subr.bf16.mxu0 0
        %360 = vmatpush2.bf16.xpose.msra.mxu0 0
        %361 = vmatprep.mubr.bf16.mxu0 0
        %362 = vmatmul.mubr.bf16.gmra.mxu0 %v326
        %v363 = vpop.f32.mrf.mxu0
        %v364 = vadd.f32 0.0, %v363
        %v365 = vpop.f32.mrf.mxu0
        %v366 = vpop.f32.mrf.mxu0
        %v367 = vpop.f32.mrf.mxu0
        %368 = vdwg.mxu0
        %vm369 = vcmask 64512
        %v370 = vsel %vm369, %v364, -inf
        %371 = vmax.xlane.f32.xlu0 %v370
        %v372 = vpop.xlane.xlu0 %371
        %v373 = vsub.f32 %v364, %v372
        %v374 = vmul.f32 %v373, 1.442695
        %v375 = vpow.pop %v374
        %v376 = vsel %vm369, %v375, 0.0
        %377 = vadd.xlane.f32.xlu0 %v376
        %v378 = vpop.xlane.xlu0 %377
        %v379 = vrcp.pop %v378
        %v380 = vmul.f32 %v375, %v379
        %v381 = vpack.c.bf16 %v380, %v380
        %v383 = vsel %vm369, %v381, 0
        %vm385 = vcmask 1043456
        %v387 = vsel %vm385, %v328, 0
        %389 = vmatprep.subr.bf16.mxu0 0
        %390 = vmatpush1.bf16.msra.mxu0 0
        %391 = vmatprep.subr.bf16.mxu0 0
        %392 = vmatpush1.bf16.msra.mxu0 0
        %393 = vmatprep.subr.bf16.mxu0 0
        %394 = vmatpush1.bf16.msra.mxu0 0
        %395 = vmatprep.subr.bf16.mxu0 0
        %396 = vmatpush1.bf16.msra.mxu0 0
        %397 = vmatprep.subr.bf16.mxu0 0
        %398 = vmatpush1.bf16.msra.mxu0 0
        %399 = vmatprep.subr.bf16.mxu0 0
        %400 = vmatpush1.bf16.msra.mxu0 0
        %401 = vmatprep.subr.bf16.mxu0 0
        %402 = vmatpush1.bf16.msra.mxu0 0
        %403 = vmatprep.subr.bf16.mxu0 0
        %404 = vmatpush1.bf16.msra.mxu0 %v387
        %405 = vmatprep.subr.bf16.mxu0 0
        %406 = vmatpush2.bf16.msra.mxu0 0
        %407 = vmatprep.subr.bf16.mxu0 0
        %408 = vmatpush2.bf16.msra.mxu0 0
        %409 = vmatprep.subr.bf16.mxu0 0
        %410 = vmatpush2.bf16.msra.mxu0 0
        %411 = vmatprep.subr.bf16.mxu0 0
        %412 = vmatpush2.bf16.msra.mxu0 0
        %413 = vmatprep.subr.bf16.mxu0 0
        %414 = vmatpush2.bf16.msra.mxu0 0
        %415 = vmatprep.subr.bf16.mxu0 0
        %416 = vmatpush2.bf16.msra.mxu0 0
        %417 = vmatprep.subr.bf16.mxu0 0
        %418 = vmatpush2.bf16.msra.mxu0 0
        %419 = vmatprep.subr.bf16.mxu0 0
        %420 = vmatpush2.bf16.msra.mxu0 0
        %421 = vmatprep.mubr.bf16.mxu0 0
        %422 = vmatmul.mubr.bf16.gmra.mxu0 %v383
        %v423 = vpop.f32.mrf.mxu0
        %v424 = vadd.f32 0.0, %v423
        %v425 = vpop.f32.mrf.mxu0
        %v426 = vpop.f32.mrf.mxu0
        %v427 = vpop.f32.mrf.mxu0
        %428 = vdwg.mxu0
        %429 = vst [vmem:[%s200] sm:$0xff] %v424
        %s430 = sand.u32 %s97, 1
        %s431 = scalar_lea.sflag [#allocation4], %s430
        %s432 = sand.u32 %s97, 1
        %s433 = smul.addr %s432, 8
        %s434 = scalar_lea.vmem [#allocation7], %s433
        // Predicated region
        $region41: #{tpu_custom_call.1} parent=31 // pred_check
          %p435 = pneg %p107
        $region42: #{tpu_custom_call.1} parent=31 // pred_check_branch
          %437 = sbr.rel (%p435) target = $region44
        $region43: #{tpu_custom_call.1} parent=31 // pred_region
          %s439 = ssub.s32 128, 128
          %440 = vsyncadd %s431, %s439
          %s441 = smul.addr %s21, 128
          %s442 = scalar_lea.hbm %s3, %s441
          %s444 = sshll.u32 %s434, 4
          %s445 = int_to_ptr.vmem [resolvable:$true] %s444
          %447 = dma.vmem_to_hbm [thread:$0]  %s445, 128, %s442, %s431
        $region44: #{tpu_custom_call.1} parent=31 // pred_fallthru
          _
      $region32: #{tpu_custom_call.1} parent=5 // pred_fallthru
        _
      %p448 = scmp.le.s32.totalorder 2, %s16
      // Predicated region
      $region45: #{tpu_custom_call.1} parent=5 // pred_check
        %p449 = pneg %p448
      $region46: #{tpu_custom_call.1} parent=5 // pred_check_branch
        %451 = sbr.rel (%p449) target = $region48
      $region47: #{tpu_custom_call.1} parent=5 // pred_region
        %s452 = ssub.s32 %s16, 2
        // Predicated region
        $region49: #{tpu_custom_call.1} parent=47 // pred_check
          %p453 = pneg %p113
        $region50: #{tpu_custom_call.1} parent=47 // pred_check_branch
          %455 = sbr.rel (%p453) target = $region52
        $region51: #{tpu_custom_call.1} parent=47 // pred_region
          %s456 = sand.u32 %s98, 1
          %s457 = scalar_lea.sflag [#allocation4], %s456
          %s458 = sand.u32 %s98, 1
          %s459 = smul.addr %s458, 8
          %s460 = scalar_lea.vmem [#allocation7], %s459
          %461 = dma.done %s457, 128
        $region52: #{tpu_custom_call.1} parent=47 // pred_fallthru
          _
      $region48: #{tpu_custom_call.1} parent=5 // pred_fallthru
        _
    $region6: #{tpu_custom_call.1} parent=1 // loop_footer
      %s20 = sadd.s32 1, %s16
    $region7: #{tpu_custom_call.1} parent=1 // loop_footer_branch
      %15 = sbr.rel target = $region3
    $region8: #{tpu_custom_call.1} parent=1 // loop_exit
      _
    %462 = vsyncpa [#allocation3], 1
    %s463 = scalar_lea.sflag [#allocation3], 1
    %464 = vsyncpa %s463, 1
    %465 = vsyncpa [#allocation6], 1
    %466 = vsyncpa [#allocation4], 1
    %s467 = scalar_lea.sflag [#allocation4], 1
    %468 = vsyncpa %s467, 1

</llo_original>
